<compile_context>
chip_gen: v7x
topology: tpu7x:2x2x1
jax: 0.10.0
libtpu: 0.0.40
codegen_flags: <defaults>
</compile_context>

<pallas_src>
import functools
import numpy as np
import jax
import jax.numpy as jnp
from jax.experimental import pallas as pl
from jax.experimental.pallas import tpu as pltpu


def _round_up(x, m):
    return ((x + m - 1) // m) * m


def _cdiv(a, b):
    return (a + b - 1) // b


# ----------------------------------------------------------------------------
# Deterministic parameter construction (replaces librosa_mel_fn / hann_window)
# ----------------------------------------------------------------------------
def librosa_mel_fn_np(sr, n_fft, n_mels, fmin, fmax):
    """Slaney-style mel filterbank, matching librosa.filters.mel defaults."""
    if fmax is None:
        fmax = sr / 2.0

    def hz_to_mel(f):
        f = np.asarray(f, dtype=np.float64)
        f_sp = 200.0 / 3.0
        min_log_hz = 1000.0
        min_log_mel = min_log_hz / f_sp
        logstep = np.log(6.4) / 27.0
        mels = f / f_sp
        mels = np.where(
            f >= min_log_hz,
            min_log_mel + np.log(np.maximum(f, 1e-10) / min_log_hz) / logstep,
            mels,
        )
        return mels

    def mel_to_hz(m):
        m = np.asarray(m, dtype=np.float64)
        f_sp = 200.0 / 3.0
        min_log_hz = 1000.0
        min_log_mel = min_log_hz / f_sp
        logstep = np.log(6.4) / 27.0
        freqs = f_sp * m
        freqs = np.where(
            m >= min_log_mel,
            min_log_hz * np.exp(logstep * (m - min_log_mel)),
            freqs,
        )
        return freqs

    n_freqs = n_fft // 2 + 1
    min_mel = hz_to_mel(fmin)
    max_mel = hz_to_mel(fmax)
    mels = np.linspace(min_mel, max_mel, n_mels + 2)
    mel_f = mel_to_hz(mels)
    fftfreqs = np.linspace(0.0, sr / 2.0, n_freqs)

    fdiff = np.diff(mel_f)
    ramps = mel_f[:, None] - fftfreqs[None, :]
    weights = np.zeros((n_mels, n_freqs), dtype=np.float64)
    for i in range(n_mels):
        lower = -ramps[i] / fdiff[i]
        upper = ramps[i + 2] / fdiff[i + 1]
        weights[i] = np.maximum(0.0, np.minimum(lower, upper))
    enorm = 2.0 / (mel_f[2: n_mels + 2] - mel_f[:n_mels])
    weights *= enorm[:, None]
    return weights.astype(np.float32)


def hann_window_np(win_length):
    """torch.hann_window(win_length), periodic=True."""
    n = np.arange(win_length, dtype=np.float64)
    return (0.5 * (1.0 - np.cos(2.0 * np.pi * n / win_length))).astype(np.float32)


# ----------------------------------------------------------------------------
# Pallas kernel
# ----------------------------------------------------------------------------
def _audio2mel_kernel(frames_ref, basis_ref, melT_ref, nyqmel_ref, imask_ref,
                      out_ref, *, n_bins):
    # frames_ref : (tile_m, n_fft)      raw audio frames (compute dtype)
    # basis_ref  : (n_fft, 2*n_bins)    [win*cos(k=0..F-1) | win*cos(Nyq), -win*sin(k=1..F-1)]
    # melT_ref   : (n_bins, NMEL_PAD)   mel_basis[:, :F].T, zero-padded to 128 mel lanes
    # nyqmel_ref : (1, NMEL_PAD)  f32   mel weights of the Nyquist bin
    # imask_ref  : (1, n_bins)    f32   1 everywhere except column 0 (Nyquist slot)
    # out_ref    : (tile_m, NMEL_PAD) f32  log-mel, (frames, mel) oriented
    acc = jnp.dot(frames_ref[...], basis_ref[...],
                  preferred_element_type=jnp.float32)        # (tile_m, 2*n_bins) f32
    re = acc[:, :n_bins]
    im = acc[:, n_bins:]
    # Column 0 of `im` carries the Nyquist-bin real part (bin 0's imag part is
    # identically zero for real input), so mask it out of the standard magnitudes.
    im0 = im * imask_ref[...]
    mag = jnp.sqrt(re * re + im0 * im0)                       # (tile_m, n_bins) f32
    nyq = jnp.abs(im[:, 0:1])                                 # (tile_m, 1)  |X[N/2]|
    mel = jnp.dot(mag.astype(melT_ref.dtype), melT_ref[...],
                  preferred_element_type=jnp.float32)         # (tile_m, NMEL_PAD)
    mel = mel + nyq * nyqmel_ref[...]                         # fold Nyquist bin back in
    out_ref[...] = jnp.log10(jnp.maximum(mel, jnp.float32(1e-5)))


# ----------------------------------------------------------------------------
# Module wrapper (mirrors PyTorch Audio2Mel.forward)
# ----------------------------------------------------------------------------
class Audio2MelPallas:
    def __init__(self, n_fft=1024, hop_length=256, win_length=1024,
                 sampling_rate=22050, n_mel_channels=80, mel_fmin=0.0,
                 mel_fmax=None, frame_tile=512, compute_dtype=jnp.bfloat16):
        assert win_length == n_fft, "kernel assumes win_length == n_fft"
        assert n_fft % hop_length == 0, "kernel assumes hop divides n_fft"
        assert n_fft % 256 == 0, "kernel assumes n_fft/2 is a multiple of 128"
        self.n_fft = n_fft
        self.hop_length = hop_length
        self.win_length = win_length
        self.n_mel_channels = n_mel_channels
        self.frame_tile = max(int(frame_tile), 8)
        self.compute_dtype = compute_dtype            # MXU operand dtype (bf16 default)

        self.ratio = n_fft // hop_length              # hop-chunks per frame
        self.n_bins = n_fft // 2                      # lane-aligned bins handled by MXU
        self.n_freqs = n_fft // 2 + 1
        self.nmel_pad = _round_up(n_mel_channels, 128)

        window = hann_window_np(win_length)                                  # (n_fft,)
        mel_basis = librosa_mel_fn_np(sampling_rate, n_fft, n_mel_channels,
                                      mel_fmin, mel_fmax)                    # (n_mel, n_freqs)

        n = np.arange(n_fft, dtype=np.float64)[:, None]
        k = np.arange(self.n_freqs, dtype=np.float64)[None, :]
        ang = 2.0 * np.pi * n * k / n_fft
        cos_full = (window[:, None] * np.cos(ang)).astype(np.float32)        # (n_fft, n_freqs)
        sin_full = (-window[:, None] * np.sin(ang)).astype(np.float32)

        F = self.n_bins
        basis = np.zeros((n_fft, 2 * F), np.float32)
        basis[:, :F] = cos_full[:, :F]          # real part, bins 0..F-1
        basis[:, F] = cos_full[:, F]            # Nyquist real part (rides zero sin-0 slot)
        basis[:, F + 1:] = sin_full[:, 1:F]     # imag part, bins 1..F-1

        melT = np.zeros((F, self.nmel_pad), np.float32)
        melT[:, :n_mel_channels] = mel_basis[:, :F].T
        nyqmel = np.zeros((1, self.nmel_pad), np.float32)
        nyqmel[0, :n_mel_channels] = mel_basis[:, F]
        imask = np.ones((1, F), np.float32)
        imask[0, 0] = 0.0

        self.basis = jnp.asarray(basis).astype(compute_dtype)   # bf16 MXU operands
        self.melT = jnp.asarray(melT).astype(compute_dtype)
        self.nyqmel = jnp.asarray(nyqmel)                        # f32 (VPU path)
        self.imask = jnp.asarray(imask)                          # f32 (VPU path)

        # f32 matrices kept for the pure-JAX reference check.
        self._ref_cos = jnp.asarray(cos_full)
        self._ref_sin = jnp.asarray(sin_full)
        self._ref_mel = jnp.asarray(mel_basis)

    def __call__(self, audio):
        # audio: (B, 1, T) float32 — PyTorch (N, C=1, T) layout.
        n_fft, hop, R = self.n_fft, self.hop_length, self.ratio
        p = (n_fft - hop) // 2
        T = audio.shape[-1]
        assert T > p, "reflect padding requires pad < signal length"
        padded = jnp.pad(audio, ((0, 0), (0, 0), (p, p)), mode="reflect")[:, 0, :]
        B, L = padded.shape
        n_frames = 1 + (L - n_fft) // hop
        assert n_frames >= 1

        # Adaptive 8-aligned frame tile: near-equal tiles, bounded padding waste.
        n_t = _cdiv(n_frames, self.frame_tile)
        tile_m = _round_up(_cdiv(n_frames, n_t), 8)
        n_tiles = _cdiv(n_frames, tile_m)
        fr_pad = n_tiles * tile_m

        # Frame the audio once in XLA: frames[b, f] = padded[b, f*hop : f*hop+n_fft].
        # Zero data duplication beyond R x audio bytes; fully hidden by the pipeline.
        c_rows = fr_pad + R - 1
        total = c_rows * hop
        if total > L:
            padded = jnp.pad(padded, ((0, 0), (0, total - L)))
        elif total < L:
            padded = padded[:, :total]               # tail samples beyond last frame
        chunks = padded.reshape(B, c_rows, hop)
        frames = jnp.concatenate([chunks[:, j:j + fr_pad, :] for j in range(R)],
                                 axis=-1).astype(self.compute_dtype)   # (B, fr_pad, n_fft)

        kernel = functools.partial(_audio2mel_kernel, n_bins=self.n_bins)

        itemsize = jnp.dtype(self.compute_dtype).itemsize
        flops = 2 * B * fr_pad * (n_fft * 2 * self.n_bins
                                  + self.n_bins * self.nmel_pad)
        transcendentals = B * fr_pad * (self.n_bins + self.nmel_pad)
        bytes_accessed = (B * fr_pad * n_fft * itemsize                 # frames
                          + n_fft * 2 * self.n_bins * itemsize          # basis
                          + self.n_bins * self.nmel_pad * itemsize      # melT
                          + (self.nmel_pad + self.n_bins) * 4           # nyqmel + mask
                          + B * fr_pad * self.nmel_pad * 4)             # out

        out = pl.pallas_call(
            kernel,
            out_shape=jax.ShapeDtypeStruct((B, fr_pad, self.nmel_pad), jnp.float32),
            grid=(B, n_tiles),
            in_specs=[
                pl.BlockSpec((None, tile_m, n_fft), lambda b, t: (b, t, 0)),
                pl.BlockSpec((n_fft, 2 * self.n_bins), lambda b, t: (0, 0)),
                pl.BlockSpec((self.n_bins, self.nmel_pad), lambda b, t: (0, 0)),
                pl.BlockSpec((1, self.nmel_pad), lambda b, t: (0, 0)),
                pl.BlockSpec((1, self.n_bins), lambda b, t: (0, 0)),
            ],
            out_specs=pl.BlockSpec((None, tile_m, self.nmel_pad),
                                   lambda b, t: (b, t, 0)),
            compiler_params=pltpu.CompilerParams(
                dimension_semantics=("parallel", "parallel")),
            cost_estimate=pl.CostEstimate(flops=int(flops),
                                          transcendentals=int(transcendentals),
                                          bytes_accessed=int(bytes_accessed)),
        )(frames, self.basis, self.melT, self.nyqmel, self.imask)

        # Kernel emits lane-dense (frames, mel); drop padding and transpose in XLA.
        return jnp.transpose(out[:, :n_frames, :self.n_mel_channels], (0, 2, 1))


# ----------------------------------------------------------------------------
# Pure-JAX reference: canonical STFT->mel->log math, numerics-matched to the
# kernel's operand dtype (f32 accumulation everywhere).
# ----------------------------------------------------------------------------
def _reference(audio, mod: Audio2MelPallas):
    dt = mod.compute_dtype
    n_fft, hop = mod.n_fft, mod.hop_length
    p = (n_fft - hop) // 2
    padded = jnp.pad(audio, ((0, 0), (0, 0), (p, p)), mode="reflect")[:, 0, :]
    B, L = padded.shape
    n_frames = 1 + (L - n_fft) // hop
    idx = np.arange(n_frames)[:, None] * hop + np.arange(n_fft)[None, :]
    frames = padded[:, jnp.asarray(idx)].astype(dt)               # (B, F#, n_fft)
    re = jnp.einsum("bfn,nk->bfk", frames, mod._ref_cos.astype(dt),
                    preferred_element_type=jnp.float32)
    im = jnp.einsum("bfn,nk->bfk", frames, mod._ref_sin.astype(dt),
                    preferred_element_type=jnp.float32)
    mag = jnp.sqrt(re * re + im * im).astype(dt)                  # (B, F#, n_freqs)
    mel = jnp.einsum("mk,bfk->bmf", mod._ref_mel.astype(dt), mag,
                     preferred_element_type=jnp.float32)          # (B, n_mel, F#)
    return jnp.log10(jnp.maximum(mel, 1e-5))


if __name__ == "__main__":
    key = jax.random.PRNGKey(0)
    k1, k2 = jax.random.split(key)

    # Case 1: tiny config. n_fft=256, hop=64, win=256, n_mel=80; audio (2, 1, 512)
    #   -> padded length 704 -> 8 frames -> output (2, 80, 8), single frame tile.
    B, T = 2, 512
    mod = Audio2MelPallas(n_fft=256, hop_length=64, win_length=256,
                          sampling_rate=22050, n_mel_channels=80,
                          mel_fmin=0.0, mel_fmax=None)
    audio = jax.random.normal(k1, (B, 1, T), dtype=jnp.float32)
    out = jax.block_until_ready(mod(audio))
    ref = jax.block_until_ready(_reference(audio, mod))
    assert out.shape == (B, mod.n_mel_channels, 8), out.shape
    np.testing.assert_allclose(np.asarray(out), np.asarray(ref),
                               rtol=1e-2, atol=1e-2)

    # Case 2: multi-tile grid (frame_tile forced small) with padded last tile and
    # a zero-padded chunk tail -> 31 frames over 2 tiles of 16.
    T2 = 2000
    mod2 = Audio2MelPallas(n_fft=256, hop_length=64, win_length=256,
                           sampling_rate=22050, n_mel_channels=80,
                           mel_fmin=0.0, mel_fmax=None, frame_tile=16)
    audio2 = jax.random.normal(k2, (B, 1, T2), dtype=jnp.float32)
    out2 = jax.block_until_ready(mod2(audio2))
    ref2 = jax.block_until_ready(_reference(audio2, mod2))
    assert out2.shape == (B, mod2.n_mel_channels, 31), out2.shape
    np.testing.assert_allclose(np.asarray(out2), np.asarray(ref2),
                               rtol=1e-2, atol=1e-2)

    print("KERNEL_OK")
</pallas_src>

<mosaic_0001>
module attributes {stable_mosaic.version = 11 : i64} {
  func.func @_audio2mel_kernel(%arg0: i32, %arg1: i32, %arg2: memref<1x8x256xbf16, #tpu.memory_space<vmem>>, %arg3: memref<256x256xbf16, #tpu.memory_space<vmem>>, %arg4: memref<128x128xbf16, #tpu.memory_space<vmem>>, %arg5: memref<1x128xf32, #tpu.memory_space<vmem>>, %arg6: memref<1x128xf32, #tpu.memory_space<vmem>>, %arg7: memref<1x8x128xf32, #tpu.memory_space<vmem>>) attributes {dimension_semantics = [#tpu.dimension_semantics<parallel>, #tpu.dimension_semantics<parallel>], iteration_bounds = array<i64: 2, 1>, scalar_prefetch = 0 : i64, scratch_operands = 0 : i64, tpu.core_type = #tpu.core_type<tc>, window_params = [{transform_indices = @transform_0, window_bounds = array<i64: 1, 8, 256>}, {pipeline_mode = #tpu.pipeline_mode<synchronous>, transform_indices = @transform_1, window_bounds = array<i64: 256, 256>}, {pipeline_mode = #tpu.pipeline_mode<synchronous>, transform_indices = @transform_2, window_bounds = array<i64: 128, 128>}, {pipeline_mode = #tpu.pipeline_mode<synchronous>, transform_indices = @transform_3, window_bounds = array<i64: 1, 128>}, {pipeline_mode = #tpu.pipeline_mode<synchronous>, transform_indices = @transform_4, window_bounds = array<i64: 1, 128>}, {transform_indices = @transform_5, window_bounds = array<i64: 1, 8, 128>}]} {
    %c0 = arith.constant 0 : index
    %c0_0 = arith.constant 0 : index
    %c0_1 = arith.constant 0 : index
    %0 = vector.load %arg2[%c0, %c0_0, %c0_1] : memref<1x8x256xbf16, #tpu.memory_space<vmem>>, vector<1x8x256xbf16>
    %1 = vector.shape_cast %0 : vector<1x8x256xbf16> to vector<8x256xbf16>
    %c0_2 = arith.constant 0 : index
    %c0_3 = arith.constant 0 : index
    %2 = vector.load %arg3[%c0_2, %c0_3] : memref<256x256xbf16, #tpu.memory_space<vmem>>, vector<256x256xbf16>
    %cst = arith.constant dense<0.000000e+00> : vector<8x256xf32>
    %3 = tpu.matmul %1, %2, %cst {dimension_numbers = #tpu.dot_dimension_numbers<[1], [0], [0], [1], [0, 0, 1, 1], [], []>} : vector<8x256xbf16>, vector<256x256xbf16>, vector<8x256xf32> -> vector<8x256xf32>
    %4 = vector.extract_strided_slice %3 {offsets = [0, 0], sizes = [8, 128], strides = [1, 1]} : vector<8x256xf32> to vector<8x128xf32>
    %5 = vector.extract_strided_slice %3 {offsets = [0, 128], sizes = [8, 128], strides = [1, 1]} : vector<8x256xf32> to vector<8x128xf32>
    %c0_4 = arith.constant 0 : index
    %c0_5 = arith.constant 0 : index
    %6 = vector.load %arg6[%c0_4, %c0_5] : memref<1x128xf32, #tpu.memory_space<vmem>>, vector<1x128xf32>
    %7 = vector.broadcast %6 : vector<1x128xf32> to vector<8x128xf32>
    %8 = arith.mulf %5, %7 : vector<8x128xf32>
    %9 = arith.mulf %4, %4 : vector<8x128xf32>
    %10 = arith.mulf %8, %8 : vector<8x128xf32>
    %11 = arith.addf %9, %10 : vector<8x128xf32>
    %12 = math.sqrt %11 : vector<8x128xf32>
    %13 = vector.extract_strided_slice %5 {offsets = [0, 0], sizes = [8, 1], strides = [1, 1]} : vector<8x128xf32> to vector<8x1xf32>
    %14 = math.absf %13 : vector<8x1xf32>
    %15 = arith.truncf %12 : vector<8x128xf32> to vector<8x128xbf16>
    %c0_6 = arith.constant 0 : index
    %c0_7 = arith.constant 0 : index
    %16 = vector.load %arg4[%c0_6, %c0_7] : memref<128x128xbf16, #tpu.memory_space<vmem>>, vector<128x128xbf16>
    %cst_8 = arith.constant dense<0.000000e+00> : vector<8x128xf32>
    %17 = tpu.matmul %15, %16, %cst_8 {dimension_numbers = #tpu.dot_dimension_numbers<[1], [0], [0], [1], [0, 0, 1, 1], [], []>} : vector<8x128xbf16>, vector<128x128xbf16>, vector<8x128xf32> -> vector<8x128xf32>
    %c0_9 = arith.constant 0 : index
    %c0_10 = arith.constant 0 : index
    %18 = vector.load %arg5[%c0_9, %c0_10] : memref<1x128xf32, #tpu.memory_space<vmem>>, vector<1x128xf32>
    %19 = vector.broadcast %14 : vector<8x1xf32> to vector<8x128xf32>
    %20 = vector.broadcast %18 : vector<1x128xf32> to vector<8x128xf32>
    %21 = arith.mulf %19, %20 : vector<8x128xf32>
    %22 = arith.addf %17, %21 : vector<8x128xf32>
    %cst_11 = arith.constant 9.99999974E-6 : f32
    %23 = vector.broadcast %cst_11 : f32 to vector<8x128xf32>
    %24 = arith.maximumf %22, %23 : vector<8x128xf32>
    %25 = math.log %24 : vector<8x128xf32>
    %cst_12 = arith.constant 0.434294492 : f32
    %26 = vector.broadcast %cst_12 : f32 to vector<8x128xf32>
    %27 = arith.mulf %25, %26 : vector<8x128xf32>
    %c0_13 = arith.constant 0 : index
    %c0_14 = arith.constant 0 : index
    %c0_15 = arith.constant 0 : index
    %28 = vector.load %arg7[%c0_13, %c0_14, %c0_15] : memref<1x8x128xf32, #tpu.memory_space<vmem>>, vector<1x8x128xf32>
    %29 = vector.shape_cast %28 : vector<1x8x128xf32> to vector<8x128xf32>
    %30 = vector.shape_cast %27 : vector<8x128xf32> to vector<1x8x128xf32>
    tpu.vector_store %arg7[%c0_13, %c0_14, %c0_15], %30 {strides = array<i32>} : memref<1x8x128xf32, #tpu.memory_space<vmem>>, vector<1x8x128xf32>,
    return
  }
  func.func @transform_0(%arg0: i32, %arg1: i32) -> (i32, i32, i32) {
    %c0_i32 = arith.constant 0 : i32
    %c0_i32_0 = arith.constant 0 : i32
    return %arg0, %arg1, %c0_i32 : i32, i32, i32
  }
  func.func @transform_1(%arg0: i32, %arg1: i32) -> (i32, i32) {
    %c0_i32 = arith.constant 0 : i32
    %c0_i32_0 = arith.constant 0 : i32
    %c0_i32_1 = arith.constant 0 : i32
    return %c0_i32, %c0_i32_0 : i32, i32
  }
  func.func @transform_2(%arg0: i32, %arg1: i32) -> (i32, i32) {
    %c0_i32 = arith.constant 0 : i32
    %c0_i32_0 = arith.constant 0 : i32
    %c0_i32_1 = arith.constant 0 : i32
    return %c0_i32, %c0_i32_0 : i32, i32
  }
  func.func @transform_3(%arg0: i32, %arg1: i32) -> (i32, i32) {
    %c0_i32 = arith.constant 0 : i32
    %c0_i32_0 = arith.constant 0 : i32
    %c0_i32_1 = arith.constant 0 : i32
    return %c0_i32, %c0_i32_0 : i32, i32
  }
  func.func @transform_4(%arg0: i32, %arg1: i32) -> (i32, i32) {
    %c0_i32 = arith.constant 0 : i32
    %c0_i32_0 = arith.constant 0 : i32
    %c0_i32_1 = arith.constant 0 : i32
    return %c0_i32, %c0_i32_0 : i32, i32
  }
  func.func @transform_5(%arg0: i32, %arg1: i32) -> (i32, i32, i32) {
    %c0_i32 = arith.constant 0 : i32
    %c0_i32_0 = arith.constant 0 : i32
    return %arg0, %arg1, %c0_i32 : i32, i32, i32
  }
}

</mosaic_0001>

<llo_original>
// kernel: tpu_custom_call.1
$region0: #{tpu_custom_call.1}
  #allocation0 [shape = 'u32[]', space=smem, size = 0x4, offset = 0x4, fixed_abs, tag = 'smem constant byte address 0x4 - core index']
  #allocation1 [shape = 'u32[144,128]{1,0:T(1,128)}', space=vmem, size = 0x12000, scoped, tag = 'internal scratch']
  %s0 = inlined_call_operand.hbm [shape: bf16[2,8,256], index: 0, kind: input, shape index: {}]
  %s1 = inlined_call_operand.hbm [shape: bf16[256,256], index: 1, kind: input, shape index: {}]
  %s2 = inlined_call_operand.hbm [shape: bf16[128,128], index: 2, kind: input, shape index: {}]
  %s3 = inlined_call_operand.vmem [shape: f32[1,128], index: 3, kind: input, shape index: {}]
  %s4 = inlined_call_operand.vmem [shape: f32[1,128], index: 4, kind: input, shape index: {}]
  %s5 = inlined_call_operand.hbm [shape: f32[2,8,128], index: 5, kind: output, shape index: {}]
  %s6 = sld [smem:[#allocation0]]
  $region65: #{tpu_custom_call.1} parent=0
    _
  %s8 = ssub.s32 1, %s6
  %s9 = scalar_select 0, %s8, %s6
  $region1: #{tpu_custom_call.1} parent=0
    #allocation2 [shape = 'u8[8192]{0}', space=vmem, size = 0x2000, scoped, tag = 'input window, operand 0']
    #allocation3 [shape = 's32[2]{0}', space=sflag, size = 0x8, scoped, tag = 'scoped memory for tpu_custom_call.1']
    #allocation4 [shape = 's32[2]{0}', space=sflag, size = 0x8, scoped, tag = 'scoped memory for tpu_custom_call.1']
    #allocation5 [shape = 'u8[131072]{0}', space=vmem, size = 0x20000, scoped, tag = 'input window, operand 1, single buffered']
    #allocation6 [shape = 's32[1]{0}', space=sflag, size = 0x4, scoped, tag = 'scoped memory for tpu_custom_call.1']
    #allocation7 [shape = 'u8[32768]{0}', space=vmem, size = 0x8000, scoped, tag = 'input window, operand 2, single buffered']
    #allocation8 [shape = 'u8[8192]{0}', space=vmem, size = 0x2000, scoped, tag = 'output window, operand 0']
    %10 = vsyncpa [#allocation3], 0
    %s11 = scalar_lea.sflag [#allocation3], 1
    %12 = vsyncpa %s11, 0
    %13 = vsyncpa [#allocation6], 0
    %14 = vsyncpa [#allocation4], 0
    %s15 = scalar_lea.sflag [#allocation4], 1
    %16 = vsyncpa %s15, 0
    loop: start=0, step=1, limit=4
    $region2: #{tpu_custom_call.1} parent=1 // loop_pre_header
      _
    $region3: #{tpu_custom_call.1} parent=1 // loop_header
      %s18 = sphi 0, %s22
      %p19 = scmp.ge.s32.totalorder %s18, 4
      %s25 = sphi 0, %s37
      %s26 = sphi 0, %s33
      %s27 = sphi 0, %s25
      %s28 = sphi 0, %s26
      %s29 = sphi 0, %s27
      %s30 = sphi 0, %s28
      %s42 = sphi 0, %s44
      %s45 = sphi 0, %s42
      %s46 = sphi 0, %s45
      %s62 = sphi 0, %s46
      %s66 = sphi 0, %s66
      %s68 = sphi 0, %s66
      %s69 = sphi 0, %s68
      %s83 = sphi 0, %s69
      %s87 = sphi 0, %s87
      %s89 = sphi 0, %s87
      %s90 = sphi 0, %s89
      %s104 = sphi 0, %s90
      %s108 = sphi 0, %s108
      %s110 = sphi 0, %s108
      %s111 = sphi 0, %s110
      %s125 = sphi 0, %s111
      %s129 = sphi 0, %s129
      %s131 = sphi 0, %s129
      %s132 = sphi 0, %s131
      %s146 = sphi 0, %s132
      %s154 = sphi 0, %s156
      %s157 = sphi 0, %s154
      %s158 = sphi 0, %s157
      %s174 = sphi 0, %s158
    $region4: #{tpu_custom_call.1} parent=1 // loop_header_branch
      %21 = sbr.rel (%p19) target = $region8
    $region5: #{tpu_custom_call.1} parent=1 // loop_body
      %s23 = ssub.s32 %s18, 1
      %s24 = ssub.s32 %s18, 2
      %s31 = sadd.s32 1, %s26
      %p32 = scmp.ge.s32.totalorder %s31, 1
      %s33 = scalar_select %p32, 0, %s31
      %s34 = sadd.s32 1, %s25
      %s35 = scalar_select %p32, %s34, %s25
      %p36 = scmp.ge.s32.totalorder %s35, 2
      %s37 = scalar_select %p36, 0, %s35
      %s38 = ssub.s32 %s25, %s37
      %s39 = ssub.s32 %s26, %s33
      %s40 = sor.u32 %s38, %s39
      %p41 = scmp.eq.s32.totalorder %s40, 0
      %s43 = sadd.s32 %s42, 1
      %s44 = scalar_select %p41, %s42, %s43
      %p47 = pneg %p41
      %p48 = scmp.eq.s32.totalorder %s18, 1
      %p49 = por %p47, %p48
      %p50 = scmp.ne.s32.totalorder %s42, %s45
      %p51 = scmp.eq.s32.totalorder %s18, 0
      %p52 = por %p50, %p51
      %p53 = scmp.ne.s32.totalorder %s42, %s45
      %p54 = scmp.eq.s32.totalorder %s23, 1
      %p55 = por %p53, %p54
      %p56 = scmp.ne.s32.totalorder %s45, %s46
      %p57 = scmp.eq.s32.totalorder %s23, 0
      %p58 = por %p56, %p57
      %p59 = scmp.ne.s32.totalorder %s45, %s46
      %p60 = scmp.eq.s32.totalorder %s24, 1
      %p61 = por %p59, %p60
      %p63 = scmp.ne.s32.totalorder %s46, %s62
      %p64 = scmp.eq.s32.totalorder %s24, 0
      %p65 = por %p63, %p64
      %s67 = sadd.s32 %s66, 1
      %p70 = scmp.eq.s32.totalorder %s18, 1
      %p71 = scmp.ne.s32.totalorder %s66, %s68
      %p72 = scmp.eq.s32.totalorder %s18, 0
      %p73 = por %p71, %p72
      %p74 = scmp.ne.s32.totalorder %s66, %s68
      %p75 = scmp.eq.s32.totalorder %s23, 1
      %p76 = por %p74, %p75
      %p77 = scmp.ne.s32.totalorder %s68, %s69
      %p78 = scmp.eq.s32.totalorder %s23, 0
      %p79 = por %p77, %p78
      %p80 = scmp.ne.s32.totalorder %s68, %s69
      %p81 = scmp.eq.s32.totalorder %s24, 1
      %p82 = por %p80, %p81
      %p84 = scmp.ne.s32.totalorder %s69, %s83
      %p85 = scmp.eq.s32.totalorder %s24, 0
      %p86 = por %p84, %p85
      %s88 = sadd.s32 %s87, 1
      %p91 = scmp.eq.s32.totalorder %s18, 1
      %p92 = scmp.ne.s32.totalorder %s87, %s89
      %p93 = scmp.eq.s32.totalorder %s18, 0
      %p94 = por %p92, %p93
      %p95 = scmp.ne.s32.totalorder %s87, %s89
      %p96 = scmp.eq.s32.totalorder %s23, 1
      %p97 = por %p95, %p96
      %p98 = scmp.ne.s32.totalorder %s89, %s90
      %p99 = scmp.eq.s32.totalorder %s23, 0
      %p100 = por %p98, %p99
      %p101 = scmp.ne.s32.totalorder %s89, %s90
      %p102 = scmp.eq.s32.totalorder %s24, 1
      %p103 = por %p101, %p102
      %p105 = scmp.ne.s32.totalorder %s90, %s104
      %p106 = scmp.eq.s32.totalorder %s24, 0
      %p107 = por %p105, %p106
      %s109 = sadd.s32 %s108, 1
      %p112 = scmp.eq.s32.totalorder %s18, 1
      %p113 = scmp.ne.s32.totalorder %s108, %s110
      %p114 = scmp.eq.s32.totalorder %s18, 0
      %p115 = por %p113, %p114
      %p116 = scmp.ne.s32.totalorder %s108, %s110
      %p117 = scmp.eq.s32.totalorder %s23, 1
      %p118 = por %p116, %p117
      %p119 = scmp.ne.s32.totalorder %s110, %s111
      %p120 = scmp.eq.s32.totalorder %s23, 0
      %p121 = por %p119, %p120
      %p122 = scmp.ne.s32.totalorder %s110, %s111
      %p123 = scmp.eq.s32.totalorder %s24, 1
      %p124 = por %p122, %p123
      %p126 = scmp.ne.s32.totalorder %s111, %s125
      %p127 = scmp.eq.s32.totalorder %s24, 0
      %p128 = por %p126, %p127
      %s130 = sadd.s32 %s129, 1
      %p133 = scmp.eq.s32.totalorder %s18, 1
      %p134 = scmp.ne.s32.totalorder %s129, %s131
      %p135 = scmp.eq.s32.totalorder %s18, 0
      %p136 = por %p134, %p135
      %p137 = scmp.ne.s32.totalorder %s129, %s131
      %p138 = scmp.eq.s32.totalorder %s23, 1
      %p139 = por %p137, %p138
      %p140 = scmp.ne.s32.totalorder %s131, %s132
      %p141 = scmp.eq.s32.totalorder %s23, 0
      %p142 = por %p140, %p141
      %p143 = scmp.ne.s32.totalorder %s131, %s132
      %p144 = scmp.eq.s32.totalorder %s24, 1
      %p145 = por %p143, %p144
      %p147 = scmp.ne.s32.totalorder %s132, %s146
      %p148 = scmp.eq.s32.totalorder %s24, 0
      %p149 = por %p147, %p148
      %s150 = ssub.s32 %s25, %s37
      %s151 = ssub.s32 %s26, %s33
      %s152 = sor.u32 %s150, %s151
      %p153 = scmp.eq.s32.totalorder %s152, 0
      %s155 = sadd.s32 %s154, 1
      %s156 = scalar_select %p153, %s154, %s155
      %p159 = pneg %p153
      %p160 = scmp.eq.s32.totalorder %s18, 1
      %p161 = por %p159, %p160
      %p162 = scmp.ne.s32.totalorder %s154, %s157
      %p163 = scmp.eq.s32.totalorder %s18, 0
      %p164 = por %p162, %p163
      %p165 = scmp.ne.s32.totalorder %s154, %s157
      %p166 = scmp.eq.s32.totalorder %s23, 1
      %p167 = por %p165, %p166
      %p168 = scmp.ne.s32.totalorder %s157, %s158
      %p169 = scmp.eq.s32.totalorder %s23, 0
      %p170 = por %p168, %p169
      %p171 = scmp.ne.s32.totalorder %s157, %s158
      %p172 = scmp.eq.s32.totalorder %s24, 1
      %p173 = por %p171, %p172
      %p175 = scmp.ne.s32.totalorder %s158, %s174
      %p176 = scmp.eq.s32.totalorder %s24, 0
      %p177 = por %p175, %p176
      %p178 = scmp.le.s32.totalorder 1, %s18
      %p179 = scmp.lt.s32.totalorder %s18, 3
      %p180 = pnand %p178, %p179
      %p181 = pneg %p180
      // Predicated region
      $region9: #{tpu_custom_call.1} parent=5 // pred_check
        _
      $region10: #{tpu_custom_call.1} parent=5 // pred_check_branch
        %183 = sbr.rel (%p180) target = $region12
      $region11: #{tpu_custom_call.1} parent=5 // pred_region
        %s184 = ssub.s32 %s18, 1
        // Predicated region
        $region13: #{tpu_custom_call.1} parent=11 // pred_check
          %p185 = pneg %p79
        $region14: #{tpu_custom_call.1} parent=11 // pred_check_branch
          %187 = sbr.rel (%p185) target = $region16
        $region15: #{tpu_custom_call.1} parent=11 // pred_region
          %s189 = ssub.s32 4096, 4096
          %190 = vsyncadd [#allocation6], %s189
          %s191 = sshll.u32 [#allocation5], 4
          %s192 = int_to_ptr.vmem [resolvable:$true] %s191
          %197 = dma.hbm_to_vmem [thread:$0]  %s1, 4096, %s192, [#allocation6], 128, 128, 8
        $region16: #{tpu_custom_call.1} parent=11 // pred_fallthru
          _
        // Predicated region
        $region17: #{tpu_custom_call.1} parent=11 // pred_check
          %p198 = pneg %p100
        $region18: #{tpu_custom_call.1} parent=11 // pred_check_branch
          %200 = sbr.rel (%p198) target = $region20
        $region19: #{tpu_custom_call.1} parent=11 // pred_region
          %s202 = ssub.s32 1024, 1024
          %203 = vsyncadd [#allocation6], %s202
          %s204 = sshll.u32 [#allocation7], 4
          %s205 = int_to_ptr.vmem [resolvable:$true] %s204
          %210 = dma.hbm_to_vmem [thread:$0]  %s2, 1024, %s205, [#allocation6], 64, 64, 4
        $region20: #{tpu_custom_call.1} parent=11 // pred_fallthru
          _
        // Predicated region
        $region21: #{tpu_custom_call.1} parent=11 // pred_check
          %p211 = pneg %p121
        $region22: #{tpu_custom_call.1} parent=11 // pred_check_branch
          %213 = sbr.rel (%p211) target = $region24
        $region23: #{tpu_custom_call.1} parent=11 // pred_region
          _
        $region24: #{tpu_custom_call.1} parent=11 // pred_fallthru
          _
        // Predicated region
        $region25: #{tpu_custom_call.1} parent=11 // pred_check
          %p214 = pneg %p142
        $region26: #{tpu_custom_call.1} parent=11 // pred_check_branch
          %216 = sbr.rel (%p214) target = $region28
        $region27: #{tpu_custom_call.1} parent=11 // pred_region
          _
        $region28: #{tpu_custom_call.1} parent=11 // pred_fallthru
          _
      $region12: #{tpu_custom_call.1} parent=5 // pred_fallthru
        _
      %p217 = scmp.lt.s32.totalorder %s18, 2
      // Predicated region
      $region29: #{tpu_custom_call.1} parent=5 // pred_check
        %p218 = pneg %p217
      $region30: #{tpu_custom_call.1} parent=5 // pred_check_branch
        %220 = sbr.rel (%p218) target = $region32
      $region31: #{tpu_custom_call.1} parent=5 // pred_region
        // Predicated region
        $region33: #{tpu_custom_call.1} parent=31 // pred_check
          %p221 = pneg %p52
        $region34: #{tpu_custom_call.1} parent=31 // pred_check_branch
          %223 = sbr.rel (%p221) target = $region36
        $region35: #{tpu_custom_call.1} parent=31 // pred_region
          %s224 = sand.u32 %s42, 1
          %s225 = scalar_lea.sflag [#allocation3], %s224
          %s226 = sand.u32 %s42, 1
          %s227 = smul.addr %s226, 8
          %s228 = scalar_lea.vmem [#allocation2], %s227
          %s230 = ssub.s32 128, 128
          %231 = vsyncadd %s225, %s230
          %s232 = smul.addr %s26, 2
          %s233 = smul.addr %s25, 2
          %s234 = sadd.s32 %s232, %s233
          %s235 = smul.addr %s234, 64
          %s236 = scalar_lea.hbm %s0, %s235
          %s238 = sshll.u32 %s228, 4
          %s239 = int_to_ptr.vmem [resolvable:$true] %s238
          %241 = dma.hbm_to_vmem [thread:$0]  %s236, 128, %s239, %s225
        $region36: #{tpu_custom_call.1} parent=31 // pred_fallthru
          _
      $region32: #{tpu_custom_call.1} parent=5 // pred_fallthru
        _
      %p242 = scmp.le.s32.totalorder 1, %s18
      %p243 = scmp.lt.s32.totalorder %s18, 3
      %p244 = pnand %p242, %p243
      %p245 = pneg %p244
      // Predicated region
      $region37: #{tpu_custom_call.1} parent=5 // pred_check
        _
      $region38: #{tpu_custom_call.1} parent=5 // pred_check_branch
        %247 = sbr.rel (%p244) target = $region40
      $region39: #{tpu_custom_call.1} parent=5 // pred_region
        %s248 = ssub.s32 %s18, 1
        %s249 = sand.u32 %s45, 1
        %s250 = scalar_lea.sflag [#allocation3], %s249
        %s251 = sand.u32 %s45, 1
        %s252 = smul.addr %s251, 8
        %s253 = scalar_lea.vmem [#allocation2], %s252
        // Predicated region
        $region41: #{tpu_custom_call.1} parent=39 // pred_check
          %p254 = pneg %p58
        $region42: #{tpu_custom_call.1} parent=39 // pred_check_branch
          %256 = sbr.rel (%p254) target = $region44
        $region43: #{tpu_custom_call.1} parent=39 // pred_region
          %257 = dma.done %s250, 128
        $region44: #{tpu_custom_call.1} parent=39 // pred_fallthru
          _
        // Predicated region
        $region45: #{tpu_custom_call.1} parent=39 // pred_check
          %p258 = pneg %p79
        $region46: #{tpu_custom_call.1} parent=39 // pred_check_branch
          %260 = sbr.rel (%p258) target = $region48
        $region47: #{tpu_custom_call.1} parent=39 // pred_region
          %261 = dma.done [#allocation6], 4096
        $region48: #{tpu_custom_call.1} parent=39 // pred_fallthru
          _
        // Predicated region
        $region49: #{tpu_custom_call.1} parent=39 // pred_check
          %p262 = pneg %p100
        $region50: #{tpu_custom_call.1} parent=39 // pred_check_branch
          %264 = sbr.rel (%p262) target = $region52
        $region51: #{tpu_custom_call.1} parent=39 // pred_region
          %265 = dma.done [#allocation6], 1024
        $region52: #{tpu_custom_call.1} parent=39 // pred_fallthru
          _
        %s266 = sand.u32 %s45, 1
        %s267 = scalar_lea.sflag [#allocation3], %s266
        %s268 = sand.u32 %s45, 1
        %s269 = smul.addr %s268, 8
        %s270 = scalar_lea.vmem [#allocation2], %s269
        %p271 = pneg %p58
        %p272 = pneg %p55
        %p273 = pneg %p79
        %p274 = pneg %p76
        %p275 = pneg %p100
        %p276 = pneg %p97
        %p277 = pneg %p121
        %p278 = pneg %p118
        %p279 = pneg %p142
        %p280 = pneg %p139
        %p281 = pneg %p170
        %p282 = pneg %p167
        %s283 = sand.u32 %s157, 1
        %s284 = scalar_lea.sflag [#allocation4], %s283
        %s285 = sand.u32 %s157, 1
        %s286 = smul.addr %s285, 8
        %s287 = scalar_lea.vmem [#allocation8], %s286
        %v289 = vld [vmem:[%s253] sm:$0xff]
        %v290 = vld [vmem:[#allocation5] sm:$0xff]
        %v291 = vld [vmem:[#allocation5 + $0x8] sm:$0xff]
        %v292 = vld [vmem:[#allocation5 + $0x10] sm:$0xff]
        %v293 = vld [vmem:[#allocation5 + $0x18] sm:$0xff]
        %v294 = vld [vmem:[#allocation5 + $0x20] sm:$0xff]
        %v295 = vld [vmem:[#allocation5 + $0x28] sm:$0xff]
        %v296 = vld [vmem:[#allocation5 + $0x30] sm:$0xff]
        %v297 = vld [vmem:[#allocation5 + $0x38] sm:$0xff]
        %v298 = vld [vmem:[#allocation5 + $0x40] sm:$0xff]
        %v299 = vld [vmem:[#allocation5 + $0x48] sm:$0xff]
        %v300 = vld [vmem:[#allocation5 + $0x50] sm:$0xff]
        %v301 = vld [vmem:[#allocation5 + $0x58] sm:$0xff]
        %v302 = vld [vmem:[#allocation5 + $0x60] sm:$0xff]
        %v303 = vld [vmem:[#allocation5 + $0x68] sm:$0xff]
        %v304 = vld [vmem:[#allocation5 + $0x70] sm:$0xff]
        %v305 = vld [vmem:[#allocation5 + $0x78] sm:$0xff]
        %v306 = vld [vmem:[#allocation5 + $0x80] sm:$0xff]
        %v307 = vld [vmem:[#allocation5 + $0x88] sm:$0xff]
        %v308 = vld [vmem:[#allocation5 + $0x90] sm:$0xff]
        %v309 = vld [vmem:[#allocation5 + $0x98] sm:$0xff]
        %v310 = vld [vmem:[#allocation5 + $0xa0] sm:$0xff]
        %v311 = vld [vmem:[#allocation5 + $0xa8] sm:$0xff]
        %v312 = vld [vmem:[#allocation5 + $0xb0] sm:$0xff]
        %v313 = vld [vmem:[#allocation5 + $0xb8] sm:$0xff]
        %v314 = vld [vmem:[#allocation5 + $0xc0] sm:$0xff]
        %v315 = vld [vmem:[#allocation5 + $0xc8] sm:$0xff]
        %v316 = vld [vmem:[#allocation5 + $0xd0] sm:$0xff]
        %v317 = vld [vmem:[#allocation5 + $0xd8] sm:$0xff]
        %v318 = vld [vmem:[#allocation5 + $0xe0] sm:$0xff]
        %v319 = vld [vmem:[#allocation5 + $0xe8] sm:$0xff]
        %v320 = vld [vmem:[#allocation5 + $0xf0] sm:$0xff]
        %v321 = vld [vmem:[#allocation5 + $0xf8] sm:$0xff]
        %v323 = vunpack.c.l.b16 %v289
        %v324 = vunpack.c.h.b16 %v289
        %v325 = vpack.c.b16 %v323, %v323
        %v326 = vpack.c.b16 %v324, %v324
        %v361 = vunpack.c.l.b16 %v290
        %v362 = vunpack.c.h.b16 %v290
        %v363 = vunpack.c.l.b16 %v291
        %v364 = vunpack.c.h.b16 %v291
        %v365 = vunpack.c.l.b16 %v292
        %v366 = vunpack.c.h.b16 %v292
        %v367 = vunpack.c.l.b16 %v293
        %v368 = vunpack.c.h.b16 %v293
        %v369 = vunpack.c.l.b16 %v294
        %v370 = vunpack.c.h.b16 %v294
        %v371 = vunpack.c.l.b16 %v295
        %v372 = vunpack.c.h.b16 %v295
        %v373 = vunpack.c.l.b16 %v296
        %v374 = vunpack.c.h.b16 %v296
        %v375 = vunpack.c.l.b16 %v297
        %v376 = vunpack.c.h.b16 %v297
        %v377 = vunpack.c.l.b16 %v298
        %v378 = vunpack.c.h.b16 %v298
        %v379 = vunpack.c.l.b16 %v299
        %v380 = vunpack.c.h.b16 %v299
        %v381 = vunpack.c.l.b16 %v300
        %v382 = vunpack.c.h.b16 %v300
        %v383 = vunpack.c.l.b16 %v301
        %v384 = vunpack.c.h.b16 %v301
        %v385 = vunpack.c.l.b16 %v302
        %v386 = vunpack.c.h.b16 %v302
        %v387 = vunpack.c.l.b16 %v303
        %v388 = vunpack.c.h.b16 %v303
        %v389 = vunpack.c.l.b16 %v304
        %v390 = vunpack.c.h.b16 %v304
        %v391 = vunpack.c.l.b16 %v305
        %v392 = vunpack.c.h.b16 %v305
        %v393 = vunpack.c.l.b16 %v306
        %v394 = vunpack.c.h.b16 %v306
        %v395 = vunpack.c.l.b16 %v307
        %v396 = vunpack.c.h.b16 %v307
        %v397 = vunpack.c.l.b16 %v308
        %v398 = vunpack.c.h.b16 %v308
        %v399 = vunpack.c.l.b16 %v309
        %v400 = vunpack.c.h.b16 %v309
        %v401 = vunpack.c.l.b16 %v310
        %v402 = vunpack.c.h.b16 %v310
        %v403 = vunpack.c.l.b16 %v311
        %v404 = vunpack.c.h.b16 %v311
        %v405 = vunpack.c.l.b16 %v312
        %v406 = vunpack.c.h.b16 %v312
        %v407 = vunpack.c.l.b16 %v313
        %v408 = vunpack.c.h.b16 %v313
        %v409 = vunpack.c.l.b16 %v314
        %v410 = vunpack.c.h.b16 %v314
        %v411 = vunpack.c.l.b16 %v315
        %v412 = vunpack.c.h.b16 %v315
        %v413 = vunpack.c.l.b16 %v316
        %v414 = vunpack.c.h.b16 %v316
        %v415 = vunpack.c.l.b16 %v317
        %v416 = vunpack.c.h.b16 %v317
        %v417 = vunpack.c.l.b16 %v318
        %v418 = vunpack.c.h.b16 %v318
        %v419 = vunpack.c.l.b16 %v319
        %v420 = vunpack.c.h.b16 %v319
        %v421 = vunpack.c.l.b16 %v320
        %v422 = vunpack.c.h.b16 %v320
        %v423 = vunpack.c.l.b16 %v321
        %v424 = vunpack.c.h.b16 %v321
        %v425 = vpack.c.b16 %v363, %v361
        %v426 = vpack.c.b16 %v364, %v362
        %v427 = vpack.c.b16 %v367, %v365
        %v428 = vpack.c.b16 %v368, %v366
        %v429 = vpack.c.b16 %v371, %v369
        %v430 = vpack.c.b16 %v372, %v370
        %v431 = vpack.c.b16 %v375, %v373
        %v432 = vpack.c.b16 %v376, %v374
        %v433 = vpack.c.b16 %v379, %v377
        %v434 = vpack.c.b16 %v380, %v378
        %v435 = vpack.c.b16 %v383, %v381
        %v436 = vpack.c.b16 %v384, %v382
        %v437 = vpack.c.b16 %v387, %v385
        %v438 = vpack.c.b16 %v388, %v386
        %v439 = vpack.c.b16 %v391, %v389
        %v440 = vpack.c.b16 %v392, %v390
        %v441 = vpack.c.b16 %v395, %v393
        %v442 = vpack.c.b16 %v396, %v394
        %v443 = vpack.c.b16 %v399, %v397
        %v444 = vpack.c.b16 %v400, %v398
        %v445 = vpack.c.b16 %v403, %v401
        %v446 = vpack.c.b16 %v404, %v402
        %v447 = vpack.c.b16 %v407, %v405
        %v448 = vpack.c.b16 %v408, %v406
        %v449 = vpack.c.b16 %v411, %v409
        %v450 = vpack.c.b16 %v412, %v410
        %v451 = vpack.c.b16 %v415, %v413
        %v452 = vpack.c.b16 %v416, %v414
        %v453 = vpack.c.b16 %v419, %v417
        %v454 = vpack.c.b16 %v420, %v418
        %v455 = vpack.c.b16 %v423, %v421
        %v456 = vpack.c.b16 %v424, %v422
        %489 = vmatprep.subr.bf16.mxu0 %v426
        %490 = vmatpush1.bf16.msra.mxu0 %v425
        %491 = vmatprep.subr.bf16.mxu0 %v428
        %492 = vmatpush1.bf16.msra.mxu0 %v427
        %493 = vmatprep.subr.bf16.mxu0 %v430
        %494 = vmatpush1.bf16.msra.mxu0 %v429
        %495 = vmatprep.subr.bf16.mxu0 %v432
        %496 = vmatpush1.bf16.msra.mxu0 %v431
        %497 = vmatprep.subr.bf16.mxu0 %v434
        %498 = vmatpush1.bf16.msra.mxu0 %v433
        %499 = vmatprep.subr.bf16.mxu0 %v436
        %500 = vmatpush1.bf16.msra.mxu0 %v435
        %501 = vmatprep.subr.bf16.mxu0 %v438
        %502 = vmatpush1.bf16.msra.mxu0 %v437
        %503 = vmatprep.subr.bf16.mxu0 %v440
        %504 = vmatpush1.bf16.msra.mxu0 %v439
        %505 = vmatprep.subr.bf16.mxu0 %v442
        %506 = vmatpush1.bf16.msra.mxu0 %v441
        %507 = vmatprep.subr.bf16.mxu0 %v444
        %508 = vmatpush1.bf16.msra.mxu0 %v443
        %509 = vmatprep.subr.bf16.mxu0 %v446
        %510 = vmatpush1.bf16.msra.mxu0 %v445
        %511 = vmatprep.subr.bf16.mxu0 %v448
        %512 = vmatpush1.bf16.msra.mxu0 %v447
        %513 = vmatprep.subr.bf16.mxu0 %v450
        %514 = vmatpush1.bf16.msra.mxu0 %v449
        %515 = vmatprep.subr.bf16.mxu0 %v452
        %516 = vmatpush1.bf16.msra.mxu0 %v451
        %517 = vmatprep.subr.bf16.mxu0 %v454
        %518 = vmatpush1.bf16.msra.mxu0 %v453
        %519 = vmatprep.subr.bf16.mxu0 %v456
        %520 = vmatpush1.bf16.msra.mxu0 %v455
        %521 = vmatprep.mubr.bf16.mxu0 %v326
        %522 = vmatmul.mubr.bf16.gmra.mrb[0].mxu0 %v325
        %v523 = vpop.f32.mrb[0].mxu0
        %v524 = vadd.f32 0.0, %v523
        %v525 = vpop.f32.mrb[0].mxu0
        %v526 = vadd.f32 0.0, %v525
        %v527 = vpop.f32.mrb[0].mxu0
        %v528 = vpop.f32.mrb[0].mxu0
        %529 = vdwg.mxu0
        %v530 = vld [vmem:[%s4] sm:$0x1]
        %v532 = vlaneseq
        %v533 = vshrl.u32 %v532, 7
        %v534 = vsub.s32 0, %v533
        %v535 = vrot.slane %v530, %v534
        %v537 = vmul.f32 %v526, %v535
        %v538 = vmul.f32 %v524, %v524
        %v539 = vmul.f32 %v537, %v537
        %v540 = vadd.f32 %v538, %v539
        %v541 = vrsqrt.pop %v540
        %v542 = vmul.f32 %v540, %v541
        %vm543 = vcmp.eq.f32.partialorder %v540, inf
        %v544 = vsel %vm543, %v540, %v542
        %vm545 = vcmp.eq.f32.partialorder %v540, 0.0
        %v546 = vand.u32 %v540, 2147483648
        %v547 = vsel %vm545, %v546, %v544
        %v548 = vand.u32 2147483647, %v526
        %v549 = vpack.c.bf16 %v547, %v547
        %v550 = vld [vmem:[#allocation7] sm:$0xf]
        %v551 = vld [vmem:[#allocation7 + $0x4] sm:$0xf]
        %v552 = vld [vmem:[#allocation7 + $0x8] sm:$0xf]
        %v553 = vld [vmem:[#allocation7 + $0xc] sm:$0xf]
        %v554 = vld [vmem:[#allocation7 + $0x10] sm:$0xf]
        %v555 = vld [vmem:[#allocation7 + $0x14] sm:$0xf]
        %v556 = vld [vmem:[#allocation7 + $0x18] sm:$0xf]
        %v557 = vld [vmem:[#allocation7 + $0x1c] sm:$0xf]
        %v558 = vld [vmem:[#allocation7 + $0x20] sm:$0xf]
        %v559 = vld [vmem:[#allocation7 + $0x24] sm:$0xf]
        %v560 = vld [vmem:[#allocation7 + $0x28] sm:$0xf]
        %v561 = vld [vmem:[#allocation7 + $0x2c] sm:$0xf]
        %v562 = vld [vmem:[#allocation7 + $0x30] sm:$0xf]
        %v563 = vld [vmem:[#allocation7 + $0x34] sm:$0xf]
        %v564 = vld [vmem:[#allocation7 + $0x38] sm:$0xf]
        %v565 = vld [vmem:[#allocation7 + $0x3c] sm:$0xf]
        %v566 = vld [vmem:[%s3] sm:$0x1]
        %568 = vset.pattern.permute.xlu0 0
        %569 = vperm.xlu0 %568, %v548
        %v570 = vpop.permute.xlu0 %569
        %v573 = vlaneseq
        %v574 = vshrl.u32 %v573, 7
        %v575 = vsub.s32 0, %v574
        %v576 = vrot.slane %v566, %v575
        %v578 = vmul.f32 %v570, %v576
        %v595 = vunpack.c.l.b16 %v550
        %v596 = vunpack.c.l.b16 %v551
        %v597 = vunpack.c.l.b16 %v552
        %v598 = vunpack.c.l.b16 %v553
        %v599 = vunpack.c.l.b16 %v554
        %v600 = vunpack.c.l.b16 %v555
        %v601 = vunpack.c.l.b16 %v556
        %v602 = vunpack.c.l.b16 %v557
        %v603 = vunpack.c.l.b16 %v558
        %v604 = vunpack.c.l.b16 %v559
        %v605 = vunpack.c.l.b16 %v560
        %v606 = vunpack.c.l.b16 %v561
        %v607 = vunpack.c.l.b16 %v562
        %v608 = vunpack.c.l.b16 %v563
        %v609 = vunpack.c.l.b16 %v564
        %v610 = vunpack.c.l.b16 %v565
        %v611 = vpack.c.b16 %v596, %v595
        %v612 = vpack.c.b16 %v598, %v597
        %v613 = vpack.c.b16 %v600, %v599
        %v614 = vpack.c.b16 %v602, %v601
        %v615 = vpack.c.b16 %v604, %v603
        %v616 = vpack.c.b16 %v606, %v605
        %v617 = vpack.c.b16 %v608, %v607
        %v618 = vpack.c.b16 %v610, %v609
        %627 = vmatprep.subr.bf16.mxu0 0
        %628 = vmatpush1.bf16.msra.mxu0 %v611
        %629 = vmatprep.subr.bf16.mxu0 0
        %630 = vmatpush1.bf16.msra.mxu0 %v612
        %631 = vmatprep.subr.bf16.mxu0 0
        %632 = vmatpush1.bf16.msra.mxu0 %v613
        %633 = vmatprep.subr.bf16.mxu0 0
        %634 = vmatpush1.bf16.msra.mxu0 %v614
        %635 = vmatprep.subr.bf16.mxu0 0
        %636 = vmatpush1.bf16.msra.mxu0 %v615
        %637 = vmatprep.subr.bf16.mxu0 0
        %638 = vmatpush1.bf16.msra.mxu0 %v616
        %639 = vmatprep.subr.bf16.mxu0 0
        %640 = vmatpush1.bf16.msra.mxu0 %v617
        %641 = vmatprep.subr.bf16.mxu0 0
        %642 = vmatpush1.bf16.msra.mxu0 %v618
        %643 = vmatprep.subr.bf16.mxu0 0
        %644 = vmatpush1.bf16.msra.mxu0 0
        %645 = vmatprep.subr.bf16.mxu0 0
        %646 = vmatpush1.bf16.msra.mxu0 0
        %647 = vmatprep.subr.bf16.mxu0 0
        %648 = vmatpush1.bf16.msra.mxu0 0
        %649 = vmatprep.subr.bf16.mxu0 0
        %650 = vmatpush1.bf16.msra.mxu0 0
        %651 = vmatprep.subr.bf16.mxu0 0
        %652 = vmatpush1.bf16.msra.mxu0 0
        %653 = vmatprep.subr.bf16.mxu0 0
        %654 = vmatpush1.bf16.msra.mxu0 0
        %655 = vmatprep.subr.bf16.mxu0 0
        %656 = vmatpush1.bf16.msra.mxu0 0
        %657 = vmatprep.subr.bf16.mxu0 0
        %658 = vmatpush1.bf16.msra.mxu0 0
        %659 = vmatprep.mubr.bf16.mxu0 0
        %660 = vmatmul.mubr.bf16.gmra.mrb[0].mxu0 %v549
        %v661 = vpop.f32.mrb[0].mxu0
        %v662 = vadd.f32 %v578, %v661
        %v663 = vpop.f32.mrb[0].mxu0
        %v664 = vpop.f32.mrb[0].mxu0
        %v665 = vpop.f32.mrb[0].mxu0
        %666 = vdwg.mxu0
        %v667 = vmax.f32 %v662, 1e-05
        %v668 = vlog2.pop %v667
        %v669 = vmul.f32 %v668, 0.6931472
        %v670 = vmul.f32 %v669, 0.4342945
        %671 = vst [vmem:[%s287] sm:$0xff] %v670
        %s672 = sand.u32 %s157, 1
        %s673 = scalar_lea.sflag [#allocation4], %s672
        %s674 = sand.u32 %s157, 1
        %s675 = smul.addr %s674, 8
        %s676 = scalar_lea.vmem [#allocation8], %s675
        // Predicated region
        $region53: #{tpu_custom_call.1} parent=39 // pred_check
          %p677 = pneg %p167
        $region54: #{tpu_custom_call.1} parent=39 // pred_check_branch
          %679 = sbr.rel (%p677) target = $region56
        $region55: #{tpu_custom_call.1} parent=39 // pred_region
          %s681 = ssub.s32 128, 128
          %682 = vsyncadd %s673, %s681
          %s683 = sadd.s32 %s28, %s27
          %s684 = smul.addr %s683, 128
          %s685 = scalar_lea.hbm %s5, %s684
          %s687 = sshll.u32 %s676, 4
          %s688 = int_to_ptr.vmem [resolvable:$true] %s687
          %690 = dma.vmem_to_hbm [thread:$0]  %s688, 128, %s685, %s673
        $region56: #{tpu_custom_call.1} parent=39 // pred_fallthru
          _
      $region40: #{tpu_custom_call.1} parent=5 // pred_fallthru
        _
      %p691 = scmp.le.s32.totalorder 2, %s18
      // Predicated region
      $region57: #{tpu_custom_call.1} parent=5 // pred_check
        %p692 = pneg %p691
      $region58: #{tpu_custom_call.1} parent=5 // pred_check_branch
        %694 = sbr.rel (%p692) target = $region60
      $region59: #{tpu_custom_call.1} parent=5 // pred_region
        %s695 = ssub.s32 %s18, 2
        // Predicated region
        $region61: #{tpu_custom_call.1} parent=59 // pred_check
          %p696 = pneg %p173
        $region62: #{tpu_custom_call.1} parent=59 // pred_check_branch
          %698 = sbr.rel (%p696) target = $region64
        $region63: #{tpu_custom_call.1} parent=59 // pred_region
          %s699 = sand.u32 %s158, 1
          %s700 = scalar_lea.sflag [#allocation4], %s699
          %s701 = sand.u32 %s158, 1
          %s702 = smul.addr %s701, 8
          %s703 = scalar_lea.vmem [#allocation8], %s702
          %704 = dma.done %s700, 128
        $region64: #{tpu_custom_call.1} parent=59 // pred_fallthru
          _
      $region60: #{tpu_custom_call.1} parent=5 // pred_fallthru
        _
    $region6: #{tpu_custom_call.1} parent=1 // loop_footer
      %s22 = sadd.s32 1, %s18
    $region7: #{tpu_custom_call.1} parent=1 // loop_footer_branch
      %17 = sbr.rel target = $region3
    $region8: #{tpu_custom_call.1} parent=1 // loop_exit
      _
    %705 = vsyncpa [#allocation3], 1
    %s706 = scalar_lea.sflag [#allocation3], 1
    %707 = vsyncpa %s706, 1
    %708 = vsyncpa [#allocation6], 1
    %709 = vsyncpa [#allocation4], 1
    %s710 = scalar_lea.sflag [#allocation4], 1
    %711 = vsyncpa %s710, 1

</llo_original>
